<compile_context>
chip_gen: v7x
topology: tpu7x:2x2x1
jax: 0.10.0
libtpu: 0.0.40
codegen_flags: <defaults>
</compile_context>

<pallas_src>
import jax
import jax.numpy as jnp
from jax.experimental import pallas as pl
from jax.experimental.pallas import tpu as pltpu

MAX_SCALE = 0.2


# ---------------------------------------------------------------------------
# Kernels
# ---------------------------------------------------------------------------
def _gaussian_noise_hwprng_kernel(seed_ref, scale_ref, x_ref, o_ref):
    """TPU path: in-kernel hardware PRNG.

    seed_ref : SMEM int32[1]  (scalar prefetch) base PRNG seed
    scale_ref: SMEM f32[B]    (scalar prefetch) per-batch scale, max_scale folded in
    x_ref    : VMEM  [1, TT, F] input tile
    o_ref    : VMEM  [1, TT, F] output tile
    """
    b = pl.program_id(0)
    t = pl.program_id(1)
    # Independent, well-mixed stream per (batch, row-tile): multi-arg seeding.
    pltpu.prng_seed(seed_ref[0], b, t)
    z = pltpu.stateful_normal(x_ref.shape, jnp.float32)   # one draw, no Box-Muller
    s = scale_ref[b]                                       # SMEM scalar read (free)
    o_ref[...] = (x_ref[...].astype(jnp.float32) + s * z).astype(o_ref.dtype)


def _gaussian_noise_addnoise_kernel(scale_ref, x_ref, n_ref, o_ref):
    """Fallback path (non-TPU backend / interpret): fused x + scale * noise."""
    b = pl.program_id(0)
    s = scale_ref[b]
    o_ref[...] = (x_ref[...].astype(jnp.float32)
                  + s * n_ref[...].astype(jnp.float32)).astype(o_ref.dtype)


# ---------------------------------------------------------------------------
# Wrapper
# ---------------------------------------------------------------------------
def _choose_row_tile(T, F, itemsize, target_bytes=2 * 1024 * 1024):
    """Largest row-tile ~target_bytes, sublane(8)-aligned unless it covers all of T."""
    rows = max(1, target_bytes // max(1, F * itemsize))
    rows = min(T, int(rows))
    if rows >= 8:
        rows -= rows % 8          # keep the (8, 128) tiling constraint happy
    return max(1, rows)


def gaussian_noise(logx, y=None, *, max_scale=MAX_SCALE, training=True, key=None):
    """JAX/Pallas equivalent of GaussianNoise.forward. Returns (logx, y)."""
    if not training:
        return logx, y
    if key is None:
        key = jax.random.PRNGKey(0)
    k_scale, k_noise = jax.random.split(key)

    orig_shape = logx.shape
    B = orig_shape[0]
    F = orig_shape[-1]
    x3 = logx.reshape(B, -1, F)           # (B, T, F); F stays on the lane axis
    _, T, _ = x3.shape

    # Per-batch uniform scale with max_scale folded in (setup glue in plain JAX);
    # consumed inside the kernel straight from SMEM.
    scale = (jnp.float32(max_scale)
             * jax.random.uniform(k_scale, (B,), dtype=jnp.float32))

    t_tile = _choose_row_tile(T, F, jnp.dtype(x3.dtype).itemsize)
    num_t = pl.cdiv(T, t_tile)
    grid = (B, num_t)

    tile_spec = pl.BlockSpec((1, t_tile, F), lambda b, t, *_: (b, t, 0))
    cparams = pltpu.CompilerParams(
        dimension_semantics=("parallel", "parallel"),   # independent steps -> megacore OK
        vmem_limit_bytes=32 * 1024 * 1024,              # blocks ~2 MiB -> plenty, v7x-safe
    )

    if jax.default_backend() == "tpu":
        # Hardware-PRNG path: noise never touches HBM.
        seed = jax.random.randint(k_noise, (1,), 0, 2**31 - 1, dtype=jnp.int32)
        out3 = pl.pallas_call(
            _gaussian_noise_hwprng_kernel,
            out_shape=jax.ShapeDtypeStruct(x3.shape, x3.dtype),
            grid_spec=pltpu.PrefetchScalarGridSpec(
                num_scalar_prefetch=2,        # seed, scale -> SMEM
                grid=grid,
                in_specs=[tile_spec],
                out_specs=tile_spec,
            ),
            compiler_params=cparams,
        )(seed, scale, x3)
    else:
        # pltpu.prng_seed / stateful_normal have no CPU lowering (previous failure);
        # pre-generate the normal noise and fuse the scale+add in the kernel.
        noise = jax.random.normal(k_noise, x3.shape, dtype=jnp.float32)
        out3 = pl.pallas_call(
            _gaussian_noise_addnoise_kernel,
            out_shape=jax.ShapeDtypeStruct(x3.shape, x3.dtype),
            grid_spec=pltpu.PrefetchScalarGridSpec(
                num_scalar_prefetch=1,        # scale -> SMEM
                grid=grid,
                in_specs=[tile_spec, tile_spec],
                out_specs=tile_spec,
            ),
            compiler_params=cparams,
        )(scale, x3, noise)

    return out3.reshape(orig_shape), y


# ---------------------------------------------------------------------------
# Demo / self-test
# ---------------------------------------------------------------------------
if __name__ == "__main__":
    root = jax.random.PRNGKey(0)
    k_x, k_noise = jax.random.split(root)

    B, T, F = 2, 8, 128
    logx = jax.random.normal(k_x, (B, T, F), dtype=jnp.float32)
    y = jnp.arange(B, dtype=jnp.int32)          # passthrough label

    # Training mode: noise added by the Pallas kernel.
    out, y_out = gaussian_noise(logx, y, max_scale=MAX_SCALE, training=True, key=k_noise)
    out = jax.block_until_ready(out)
    assert out.shape == logx.shape and out.dtype == logx.dtype
    assert y_out is y
    diff = out - logx
    assert bool(jnp.isfinite(diff).all())
    assert float(jnp.abs(diff).max()) > 0.0     # noise actually applied

    # Eval mode: exact passthrough (self.training == False).
    out_eval, _ = gaussian_noise(logx, y, training=False)
    assert bool((out_eval == logx).all())

    print("KERNEL_OK")
</pallas_src>

<mosaic_0001>
module attributes {stable_mosaic.version = 11 : i64} {
  func.func @_gaussian_noise_addnoise_kernel(%arg0: i32, %arg1: i32, %arg2: memref<2xf32, #tpu.memory_space<smem>>, %arg3: memref<1x8x128xf32, #tpu.memory_space<vmem>>, %arg4: memref<1x8x128xf32, #tpu.memory_space<vmem>>, %arg5: memref<1x8x128xf32, #tpu.memory_space<vmem>>) attributes {dimension_semantics = [#tpu.dimension_semantics<parallel>, #tpu.dimension_semantics<parallel>], iteration_bounds = array<i64: 2, 1>, scalar_prefetch = 1 : i64, scratch_operands = 0 : i64, tpu.core_type = #tpu.core_type<tc>, window_params = [{transform_indices = @transform_0, window_bounds = array<i64: 1, 8, 128>}, {transform_indices = @transform_1, window_bounds = array<i64: 1, 8, 128>}, {transform_indices = @transform_2, window_bounds = array<i64: 1, 8, 128>}]} {
    %0 = arith.index_cast %arg0 : i32 to index
    %1 = memref.load %arg2[%0] : memref<2xf32, #tpu.memory_space<smem>>
    %c0 = arith.constant 0 : index
    %c0_0 = arith.constant 0 : index
    %c0_1 = arith.constant 0 : index
    %2 = vector.load %arg3[%c0, %c0_0, %c0_1] : memref<1x8x128xf32, #tpu.memory_space<vmem>>, vector<1x8x128xf32>
    %c0_2 = arith.constant 0 : index
    %c0_3 = arith.constant 0 : index
    %c0_4 = arith.constant 0 : index
    %3 = vector.load %arg4[%c0_2, %c0_3, %c0_4] : memref<1x8x128xf32, #tpu.memory_space<vmem>>, vector<1x8x128xf32>
    %4 = vector.broadcast %1 : f32 to vector<1x8x128xf32>
    %5 = arith.mulf %4, %3 : vector<1x8x128xf32>
    %6 = arith.addf %2, %5 : vector<1x8x128xf32>
    %c0_5 = arith.constant 0 : index
    %c0_6 = arith.constant 0 : index
    %c0_7 = arith.constant 0 : index
    %7 = vector.load %arg5[%c0_5, %c0_6, %c0_7] : memref<1x8x128xf32, #tpu.memory_space<vmem>>, vector<1x8x128xf32>
    tpu.vector_store %arg5[%c0_5, %c0_6, %c0_7], %6 {strides = array<i32>} : memref<1x8x128xf32, #tpu.memory_space<vmem>>, vector<1x8x128xf32>,
    return
  }
  func.func @transform_0(%arg0: i32, %arg1: i32, %arg2: memref<2xf32, #tpu.memory_space<smem>>) -> (i32, i32, i32) {
    %c0_i32 = arith.constant 0 : i32
    %c0_i32_0 = arith.constant 0 : i32
    return %arg0, %arg1, %c0_i32 : i32, i32, i32
  }
  func.func @transform_1(%arg0: i32, %arg1: i32, %arg2: memref<2xf32, #tpu.memory_space<smem>>) -> (i32, i32, i32) {
    %c0_i32 = arith.constant 0 : i32
    %c0_i32_0 = arith.constant 0 : i32
    return %arg0, %arg1, %c0_i32 : i32, i32, i32
  }
  func.func @transform_2(%arg0: i32, %arg1: i32, %arg2: memref<2xf32, #tpu.memory_space<smem>>) -> (i32, i32, i32) {
    %c0_i32 = arith.constant 0 : i32
    %c0_i32_0 = arith.constant 0 : i32
    return %arg0, %arg1, %c0_i32 : i32, i32, i32
  }
}

</mosaic_0001>

<llo_original>
// kernel: tpu_custom_call.1
$region0: #{tpu_custom_call.1}
  #allocation0 [shape = 'u32[]', space=smem, size = 0x4, offset = 0x4, fixed_abs, tag = 'smem constant byte address 0x4 - core index']
  #allocation1 [shape = 'u32[144,128]{1,0:T(1,128)}', space=vmem, size = 0x12000, scoped, tag = 'internal scratch']
  #allocation2 [shape = 's32[1]{0}', space=sflag, size = 0x4, scoped, tag = 'scoped memory for tpu_custom_call.1']
  #allocation3 [shape = 'u8[512]{0}', space=smem, size = 0x200, scoped, tag = 'prefetched SMEM operand 0']
  %s0 = inlined_call_operand.hbm [shape: f32[2], index: 0, kind: input, shape index: {}]
  %s1 = inlined_call_operand.hbm [shape: f32[2,8,128], index: 1, kind: input, shape index: {}]
  %s2 = inlined_call_operand.hbm [shape: f32[2,8,128], index: 2, kind: input, shape index: {}]
  %s3 = inlined_call_operand.hbm [shape: f32[2,8,128], index: 3, kind: output, shape index: {}]
  %s4 = sld [smem:[#allocation0]]
  $region49: #{tpu_custom_call.1} parent=0
    _
  %s6 = ssub.s32 1, %s4
  %s7 = scalar_select 0, %s6, %s4
  %9 = dma.hbm_to_smem %s0, 16, [#allocation3], [#allocation2]
  %10 = dma.done [#allocation2], 16
  %11 = sfence
  $region1: #{tpu_custom_call.1} parent=0
    #allocation4 [shape = 'u8[8192]{0}', space=vmem, size = 0x2000, scoped, tag = 'input window, operand 1']
    #allocation5 [shape = 's32[2]{0}', space=sflag, size = 0x8, scoped, tag = 'scoped memory for tpu_custom_call.1']
    #allocation6 [shape = 's32[2]{0}', space=sflag, size = 0x8, scoped, tag = 'scoped memory for tpu_custom_call.1']
    #allocation7 [shape = 'u8[8192]{0}', space=vmem, size = 0x2000, scoped, tag = 'input window, operand 2']
    #allocation8 [shape = 's32[2]{0}', space=sflag, size = 0x8, scoped, tag = 'scoped memory for tpu_custom_call.1']
    #allocation9 [shape = 'u8[8192]{0}', space=vmem, size = 0x2000, scoped, tag = 'output window, operand 0']
    %12 = vsyncpa [#allocation5], 0
    %s13 = scalar_lea.sflag [#allocation5], 1
    %14 = vsyncpa %s13, 0
    %15 = vsyncpa [#allocation8], 0
    %s16 = scalar_lea.sflag [#allocation8], 1
    %17 = vsyncpa %s16, 0
    %18 = vsyncpa [#allocation6], 0
    %s19 = scalar_lea.sflag [#allocation6], 1
    %20 = vsyncpa %s19, 0
    loop: start=0, step=1, limit=4
    $region2: #{tpu_custom_call.1} parent=1 // loop_pre_header
      _
    $region3: #{tpu_custom_call.1} parent=1 // loop_header
      %s22 = sphi 0, %s26
      %p23 = scmp.ge.s32.totalorder %s22, 4
      %s29 = sphi 0, %s41
      %s30 = sphi 0, %s37
      %s31 = sphi 0, %s29
      %s32 = sphi 0, %s30
      %s33 = sphi 0, %s31
      %s34 = sphi 0, %s32
      %s46 = sphi 0, %s48
      %s49 = sphi 0, %s46
      %s50 = sphi 0, %s49
      %s66 = sphi 0, %s50
      %s74 = sphi 0, %s76
      %s77 = sphi 0, %s74
      %s78 = sphi 0, %s77
      %s94 = sphi 0, %s78
      %s102 = sphi 0, %s104
      %s105 = sphi 0, %s102
      %s106 = sphi 0, %s105
      %s122 = sphi 0, %s106
    $region4: #{tpu_custom_call.1} parent=1 // loop_header_branch
      %25 = sbr.rel (%p23) target = $region8
    $region5: #{tpu_custom_call.1} parent=1 // loop_body
      %s27 = ssub.s32 %s22, 1
      %s28 = ssub.s32 %s22, 2
      %s35 = sadd.s32 1, %s30
      %p36 = scmp.ge.s32.totalorder %s35, 1
      %s37 = scalar_select %p36, 0, %s35
      %s38 = sadd.s32 1, %s29
      %s39 = scalar_select %p36, %s38, %s29
      %p40 = scmp.ge.s32.totalorder %s39, 2
      %s41 = scalar_select %p40, 0, %s39
      %s42 = ssub.s32 %s29, %s41
      %s43 = ssub.s32 %s30, %s37
      %s44 = sor.u32 %s42, %s43
      %p45 = scmp.eq.s32.totalorder %s44, 0
      %s47 = sadd.s32 %s46, 1
      %s48 = scalar_select %p45, %s46, %s47
      %p51 = pneg %p45
      %p52 = scmp.eq.s32.totalorder %s22, 1
      %p53 = por %p51, %p52
      %p54 = scmp.ne.s32.totalorder %s46, %s49
      %p55 = scmp.eq.s32.totalorder %s22, 0
      %p56 = por %p54, %p55
      %p57 = scmp.ne.s32.totalorder %s46, %s49
      %p58 = scmp.eq.s32.totalorder %s27, 1
      %p59 = por %p57, %p58
      %p60 = scmp.ne.s32.totalorder %s49, %s50
      %p61 = scmp.eq.s32.totalorder %s27, 0
      %p62 = por %p60, %p61
      %p63 = scmp.ne.s32.totalorder %s49, %s50
      %p64 = scmp.eq.s32.totalorder %s28, 1
      %p65 = por %p63, %p64
      %p67 = scmp.ne.s32.totalorder %s50, %s66
      %p68 = scmp.eq.s32.totalorder %s28, 0
      %p69 = por %p67, %p68
      %s70 = ssub.s32 %s29, %s41
      %s71 = ssub.s32 %s30, %s37
      %s72 = sor.u32 %s70, %s71
      %p73 = scmp.eq.s32.totalorder %s72, 0
      %s75 = sadd.s32 %s74, 1
      %s76 = scalar_select %p73, %s74, %s75
      %p79 = pneg %p73
      %p80 = scmp.eq.s32.totalorder %s22, 1
      %p81 = por %p79, %p80
      %p82 = scmp.ne.s32.totalorder %s74, %s77
      %p83 = scmp.eq.s32.totalorder %s22, 0
      %p84 = por %p82, %p83
      %p85 = scmp.ne.s32.totalorder %s74, %s77
      %p86 = scmp.eq.s32.totalorder %s27, 1
      %p87 = por %p85, %p86
      %p88 = scmp.ne.s32.totalorder %s77, %s78
      %p89 = scmp.eq.s32.totalorder %s27, 0
      %p90 = por %p88, %p89
      %p91 = scmp.ne.s32.totalorder %s77, %s78
      %p92 = scmp.eq.s32.totalorder %s28, 1
      %p93 = por %p91, %p92
      %p95 = scmp.ne.s32.totalorder %s78, %s94
      %p96 = scmp.eq.s32.totalorder %s28, 0
      %p97 = por %p95, %p96
      %s98 = ssub.s32 %s29, %s41
      %s99 = ssub.s32 %s30, %s37
      %s100 = sor.u32 %s98, %s99
      %p101 = scmp.eq.s32.totalorder %s100, 0
      %s103 = sadd.s32 %s102, 1
      %s104 = scalar_select %p101, %s102, %s103
      %p107 = pneg %p101
      %p108 = scmp.eq.s32.totalorder %s22, 1
      %p109 = por %p107, %p108
      %p110 = scmp.ne.s32.totalorder %s102, %s105
      %p111 = scmp.eq.s32.totalorder %s22, 0
      %p112 = por %p110, %p111
      %p113 = scmp.ne.s32.totalorder %s102, %s105
      %p114 = scmp.eq.s32.totalorder %s27, 1
      %p115 = por %p113, %p114
      %p116 = scmp.ne.s32.totalorder %s105, %s106
      %p117 = scmp.eq.s32.totalorder %s27, 0
      %p118 = por %p116, %p117
      %p119 = scmp.ne.s32.totalorder %s105, %s106
      %p120 = scmp.eq.s32.totalorder %s28, 1
      %p121 = por %p119, %p120
      %p123 = scmp.ne.s32.totalorder %s106, %s122
      %p124 = scmp.eq.s32.totalorder %s28, 0
      %p125 = por %p123, %p124
      %p126 = scmp.le.s32.totalorder 1, %s22
      %p127 = scmp.lt.s32.totalorder %s22, 3
      %p128 = pnand %p126, %p127
      %p129 = pneg %p128
      // Predicated region
      $region9: #{tpu_custom_call.1} parent=5 // pred_check
        _
      $region10: #{tpu_custom_call.1} parent=5 // pred_check_branch
        %131 = sbr.rel (%p128) target = $region12
      $region11: #{tpu_custom_call.1} parent=5 // pred_region
        %s132 = ssub.s32 %s22, 1
      $region12: #{tpu_custom_call.1} parent=5 // pred_fallthru
        _
      %p133 = scmp.lt.s32.totalorder %s22, 2
      // Predicated region
      $region13: #{tpu_custom_call.1} parent=5 // pred_check
        %p134 = pneg %p133
      $region14: #{tpu_custom_call.1} parent=5 // pred_check_branch
        %136 = sbr.rel (%p134) target = $region16
      $region15: #{tpu_custom_call.1} parent=5 // pred_region
        // Predicated region
        $region17: #{tpu_custom_call.1} parent=15 // pred_check
          %p137 = pneg %p56
        $region18: #{tpu_custom_call.1} parent=15 // pred_check_branch
          %139 = sbr.rel (%p137) target = $region20
        $region19: #{tpu_custom_call.1} parent=15 // pred_region
          %s140 = sand.u32 %s46, 1
          %s141 = scalar_lea.sflag [#allocation5], %s140
          %s142 = sand.u32 %s46, 1
          %s143 = smul.addr %s142, 8
          %s144 = scalar_lea.vmem [#allocation4], %s143
          %s146 = ssub.s32 128, 128
          %147 = vsyncadd %s141, %s146
          %s148 = sadd.s32 %s30, %s29
          %s149 = smul.addr %s148, 128
          %s150 = scalar_lea.hbm %s1, %s149
          %s152 = sshll.u32 %s144, 4
          %s153 = int_to_ptr.vmem [resolvable:$true] %s152
          %155 = dma.hbm_to_vmem [thread:$0]  %s150, 128, %s153, %s141
        $region20: #{tpu_custom_call.1} parent=15 // pred_fallthru
          _
        // Predicated region
        $region21: #{tpu_custom_call.1} parent=15 // pred_check
          %p156 = pneg %p84
        $region22: #{tpu_custom_call.1} parent=15 // pred_check_branch
          %158 = sbr.rel (%p156) target = $region24
        $region23: #{tpu_custom_call.1} parent=15 // pred_region
          %s159 = sand.u32 %s74, 1
          %s160 = scalar_lea.sflag [#allocation8], %s159
          %s161 = sand.u32 %s74, 1
          %s162 = smul.addr %s161, 8
          %s163 = scalar_lea.vmem [#allocation7], %s162
          %s165 = ssub.s32 128, 128
          %166 = vsyncadd %s160, %s165
          %s167 = sadd.s32 %s30, %s29
          %s168 = smul.addr %s167, 128
          %s169 = scalar_lea.hbm %s2, %s168
          %s171 = sshll.u32 %s163, 4
          %s172 = int_to_ptr.vmem [resolvable:$true] %s171
          %174 = dma.hbm_to_vmem [thread:$0]  %s169, 128, %s172, %s160
        $region24: #{tpu_custom_call.1} parent=15 // pred_fallthru
          _
      $region16: #{tpu_custom_call.1} parent=5 // pred_fallthru
        _
      %p175 = scmp.le.s32.totalorder 1, %s22
      %p176 = scmp.lt.s32.totalorder %s22, 3
      %p177 = pnand %p175, %p176
      %p178 = pneg %p177
      // Predicated region
      $region25: #{tpu_custom_call.1} parent=5 // pred_check
        _
      $region26: #{tpu_custom_call.1} parent=5 // pred_check_branch
        %180 = sbr.rel (%p177) target = $region28
      $region27: #{tpu_custom_call.1} parent=5 // pred_region
        %s181 = ssub.s32 %s22, 1
        %s182 = sand.u32 %s49, 1
        %s183 = scalar_lea.sflag [#allocation5], %s182
        %s184 = sand.u32 %s49, 1
        %s185 = smul.addr %s184, 8
        %s186 = scalar_lea.vmem [#allocation4], %s185
        // Predicated region
        $region29: #{tpu_custom_call.1} parent=27 // pred_check
          %p187 = pneg %p62
        $region30: #{tpu_custom_call.1} parent=27 // pred_check_branch
          %189 = sbr.rel (%p187) target = $region32
        $region31: #{tpu_custom_call.1} parent=27 // pred_region
          %190 = dma.done %s183, 128
        $region32: #{tpu_custom_call.1} parent=27 // pred_fallthru
          _
        %s191 = sand.u32 %s77, 1
        %s192 = scalar_lea.sflag [#allocation8], %s191
        %s193 = sand.u32 %s77, 1
        %s194 = smul.addr %s193, 8
        %s195 = scalar_lea.vmem [#allocation7], %s194
        // Predicated region
        $region33: #{tpu_custom_call.1} parent=27 // pred_check
          %p196 = pneg %p90
        $region34: #{tpu_custom_call.1} parent=27 // pred_check_branch
          %198 = sbr.rel (%p196) target = $region36
        $region35: #{tpu_custom_call.1} parent=27 // pred_region
          %199 = dma.done %s192, 128
        $region36: #{tpu_custom_call.1} parent=27 // pred_fallthru
          _
        %s200 = sand.u32 %s49, 1
        %s201 = scalar_lea.sflag [#allocation5], %s200
        %s202 = sand.u32 %s49, 1
        %s203 = smul.addr %s202, 8
        %s204 = scalar_lea.vmem [#allocation4], %s203
        %p205 = pneg %p62
        %p206 = pneg %p59
        %s207 = sand.u32 %s77, 1
        %s208 = scalar_lea.sflag [#allocation8], %s207
        %s209 = sand.u32 %s77, 1
        %s210 = smul.addr %s209, 8
        %s211 = scalar_lea.vmem [#allocation7], %s210
        %p212 = pneg %p90
        %p213 = pneg %p87
        %p214 = pneg %p118
        %p215 = pneg %p115
        %s216 = sand.u32 %s105, 1
        %s217 = scalar_lea.sflag [#allocation6], %s216
        %s218 = sand.u32 %s105, 1
        %s219 = smul.addr %s218, 8
        %s220 = scalar_lea.vmem [#allocation9], %s219
        %s221 = sld [smem:[#allocation3 + %s31]]
        %v222 = vld [vmem:[%s186] sm:$0xff]
        %v223 = vld [vmem:[%s195] sm:$0xff]
        %v224 = vstv %s221
        %v225 = vmul.f32 %v224, %v223
        %v226 = vadd.f32 %v222, %v225
        %227 = vst [vmem:[%s220] sm:$0xff] %v226
        %s228 = sand.u32 %s105, 1
        %s229 = scalar_lea.sflag [#allocation6], %s228
        %s230 = sand.u32 %s105, 1
        %s231 = smul.addr %s230, 8
        %s232 = scalar_lea.vmem [#allocation9], %s231
        // Predicated region
        $region37: #{tpu_custom_call.1} parent=27 // pred_check
          %p233 = pneg %p115
        $region38: #{tpu_custom_call.1} parent=27 // pred_check_branch
          %235 = sbr.rel (%p233) target = $region40
        $region39: #{tpu_custom_call.1} parent=27 // pred_region
          %s237 = ssub.s32 128, 128
          %238 = vsyncadd %s229, %s237
          %s239 = sadd.s32 %s32, %s31
          %s240 = smul.addr %s239, 128
          %s241 = scalar_lea.hbm %s3, %s240
          %s243 = sshll.u32 %s232, 4
          %s244 = int_to_ptr.vmem [resolvable:$true] %s243
          %246 = dma.vmem_to_hbm [thread:$0]  %s244, 128, %s241, %s229
        $region40: #{tpu_custom_call.1} parent=27 // pred_fallthru
          _
      $region28: #{tpu_custom_call.1} parent=5 // pred_fallthru
        _
      %p247 = scmp.le.s32.totalorder 2, %s22
      // Predicated region
      $region41: #{tpu_custom_call.1} parent=5 // pred_check
        %p248 = pneg %p247
      $region42: #{tpu_custom_call.1} parent=5 // pred_check_branch
        %250 = sbr.rel (%p248) target = $region44
      $region43: #{tpu_custom_call.1} parent=5 // pred_region
        %s251 = ssub.s32 %s22, 2
        // Predicated region
        $region45: #{tpu_custom_call.1} parent=43 // pred_check
          %p252 = pneg %p121
        $region46: #{tpu_custom_call.1} parent=43 // pred_check_branch
          %254 = sbr.rel (%p252) target = $region48
        $region47: #{tpu_custom_call.1} parent=43 // pred_region
          %s255 = sand.u32 %s106, 1
          %s256 = scalar_lea.sflag [#allocation6], %s255
          %s257 = sand.u32 %s106, 1
          %s258 = smul.addr %s257, 8
          %s259 = scalar_lea.vmem [#allocation9], %s258
          %260 = dma.done %s256, 128
        $region48: #{tpu_custom_call.1} parent=43 // pred_fallthru
          _
      $region44: #{tpu_custom_call.1} parent=5 // pred_fallthru
        _
    $region6: #{tpu_custom_call.1} parent=1 // loop_footer
      %s26 = sadd.s32 1, %s22
    $region7: #{tpu_custom_call.1} parent=1 // loop_footer_branch
      %21 = sbr.rel target = $region3
    $region8: #{tpu_custom_call.1} parent=1 // loop_exit
      _
    %261 = vsyncpa [#allocation5], 1
    %s262 = scalar_lea.sflag [#allocation5], 1
    %263 = vsyncpa %s262, 1
    %264 = vsyncpa [#allocation8], 1
    %s265 = scalar_lea.sflag [#allocation8], 1
    %266 = vsyncpa %s265, 1
    %267 = vsyncpa [#allocation6], 1
    %s268 = scalar_lea.sflag [#allocation6], 1
    %269 = vsyncpa %s268, 1

</llo_original>
